<compile_context>
chip_gen: v7x
topology: tpu7x:2x2x1
jax: 0.10.0
libtpu: 0.0.40
codegen_flags: <defaults>
</compile_context>

<pallas_src>
import functools
from dataclasses import dataclass

import jax
import jax.numpy as jnp
from jax.experimental import pallas as pl
from jax.experimental.pallas import tpu as pltpu


@dataclass
class ModelArgs:
    dim: int
    n_layers: int
    head_dim: int
    hidden_dim: int
    n_heads: int
    n_kv_heads: int
    sliding_window: int
    norm_eps: float
    vocab_size: int
    max_batch_size: int = 0


def _pick_tile(dim: int, preferred: int) -> int:
    """Largest clean tile: `preferred` if it divides `dim`, else the full dim."""
    return preferred if dim % preferred == 0 else dim


# --------------------------------------------------------------------------- #
# Tiled matmul (+ optional bias) : out = x @ w + b,  fp32 accumulation
# --------------------------------------------------------------------------- #
def _matmul_kernel(x_ref, w_ref, b_ref, o_ref, acc_ref):
    @pl.when(pl.program_id(2) == 0)
    def _():
        acc_ref[...] = jnp.zeros_like(acc_ref)

    acc_ref[...] += jnp.dot(x_ref[...], w_ref[...],
                            preferred_element_type=jnp.float32)

    @pl.when(pl.program_id(2) == pl.num_programs(2) - 1)
    def _():
        o_ref[...] = (acc_ref[...] + b_ref[...].astype(jnp.float32)).astype(o_ref.dtype)


def pallas_linear(x, w, b=None, out_dtype=jnp.bfloat16):
    """x: (M, K) bf16, w: (K, N) bf16, b: (N,) bf16 or None -> (M, N) out_dtype."""
    M, K = x.shape
    K2, N = w.shape
    assert K == K2
    if b is None:
        b = jnp.zeros((N,), jnp.bfloat16)
    b2 = b.reshape(1, N).astype(jnp.bfloat16)

    TM = _pick_tile(M, 256)
    TN = _pick_tile(N, 256)
    TK = _pick_tile(K, 512)
    grid = (M // TM, N // TN, K // TK)

    return pl.pallas_call(
        _matmul_kernel,
        out_shape=jax.ShapeDtypeStruct((M, N), out_dtype),
        grid_spec=pltpu.PrefetchScalarGridSpec(
            num_scalar_prefetch=0,
            grid=grid,
            in_specs=[
                pl.BlockSpec((TM, TK), lambda i, j, k: (i, k)),
                pl.BlockSpec((TK, TN), lambda i, j, k: (k, j)),
                pl.BlockSpec((1, TN), lambda i, j, k: (0, j)),
            ],
            out_specs=pl.BlockSpec((TM, TN), lambda i, j, k: (i, j)),
            scratch_shapes=[pltpu.VMEM((TM, TN), jnp.float32)],
        ),
        compiler_params=pltpu.CompilerParams(
            dimension_semantics=("parallel", "parallel", "arbitrary")),
    )(x.astype(jnp.bfloat16), w, b2)


# --------------------------------------------------------------------------- #
# RMSNorm (fp32 norm, bf16 output * bf16 weight)
# --------------------------------------------------------------------------- #
def _rmsnorm_kernel(x_ref, w_ref, o_ref, *, eps):
    x = x_ref[...].astype(jnp.float32)
    inv = jax.lax.rsqrt(jnp.mean(x * x, axis=-1, keepdims=True) + eps)
    o_ref[...] = (x * inv).astype(o_ref.dtype) * w_ref[...]


def pallas_rmsnorm(x, w, eps):
    T, D = x.shape
    TB = _pick_tile(T, 256)
    w2 = w.reshape(1, D).astype(jnp.bfloat16)
    return pl.pallas_call(
        functools.partial(_rmsnorm_kernel, eps=eps),
        out_shape=jax.ShapeDtypeStruct((T, D), jnp.bfloat16),
        grid_spec=pltpu.PrefetchScalarGridSpec(
            num_scalar_prefetch=0,
            grid=(T // TB,),
            in_specs=[
                pl.BlockSpec((TB, D), lambda i: (i, 0)),
                pl.BlockSpec((1, D), lambda i: (0, 0)),
            ],
            out_specs=pl.BlockSpec((TB, D), lambda i: (i, 0)),
        ),
        compiler_params=pltpu.CompilerParams(dimension_semantics=("parallel",)),
    )(x.astype(jnp.bfloat16), w2)


# --------------------------------------------------------------------------- #
# Rotary embeddings (half-split complex-mult form, as in the reference)
# --------------------------------------------------------------------------- #
def _rope_kernel(x_ref, cos_ref, sin_ref, o_ref):
    x = x_ref[...].astype(jnp.float32)               # (TR, S, hd)
    hd = x.shape[-1]
    x1 = x[..., : hd // 2]
    x2 = x[..., hd // 2:]
    c = cos_ref[...][None, :, :]                     # (1, S, hd//2)
    s = sin_ref[...][None, :, :]
    o1 = x1 * c - x2 * s
    o2 = x1 * s + x2 * c
    o_ref[...] = jnp.concatenate([o1, o2], axis=-1).astype(o_ref.dtype)


def pallas_rope(x, cos, sin):
    """x: (R, S, hd) bf16 (R = B*H rows); cos/sin: (S, hd//2) f32."""
    R, S, hd = x.shape
    assert hd % 2 == 0
    TR = _pick_tile(R, 64)
    return pl.pallas_call(
        _rope_kernel,
        out_shape=jax.ShapeDtypeStruct((R, S, hd), jnp.bfloat16),
        grid_spec=pltpu.PrefetchScalarGridSpec(
            num_scalar_prefetch=0,
            grid=(R // TR,),
            in_specs=[
                pl.BlockSpec((TR, S, hd), lambda i: (i, 0, 0)),
                pl.BlockSpec((S, hd // 2), lambda i: (0, 0)),
                pl.BlockSpec((S, hd // 2), lambda i: (0, 0)),
            ],
            out_specs=pl.BlockSpec((TR, S, hd), lambda i: (i, 0, 0)),
        ),
        compiler_params=pltpu.CompilerParams(dimension_semantics=("parallel",)),
    )(x, cos, sin)


# --------------------------------------------------------------------------- #
# Attention (per batch/head grid point; GQA handled in the K/V index_map)
# --------------------------------------------------------------------------- #
def _attn_kernel(q_ref, k_ref, v_ref, m_ref, o_ref, *, scale):
    q = q_ref[0, 0]                                  # (S, hd) bf16
    k = k_ref[0, 0]
    v = v_ref[0, 0]
    s = jax.lax.dot_general(q, k, (((1,), (1,)), ((), ())),
                            preferred_element_type=jnp.float32)
    s = s * scale + m_ref[...]
    m = jnp.max(s, axis=-1, keepdims=True)
    p = jnp.exp(s - m)
    p = p / jnp.sum(p, axis=-1, keepdims=True)
    out = jnp.dot(p.astype(v.dtype), v, preferred_element_type=jnp.float32)
    o_ref[0, 0] = out.astype(o_ref.dtype)


def pallas_attention(q, k, v, mask, scale):
    """q: (B, H, S, hd); k, v: (B, Hkv, S, hd); mask: (S, S) f32 -> (B, H, S, hd)."""
    B, H, S, hd = q.shape
    Hkv = k.shape[1]
    rep = H // Hkv
    return pl.pallas_call(
        functools.partial(_attn_kernel, scale=scale),
        out_shape=jax.ShapeDtypeStruct((B, H, S, hd), jnp.bfloat16),
        grid_spec=pltpu.PrefetchScalarGridSpec(
            num_scalar_prefetch=0,
            grid=(B, H),
            in_specs=[
                pl.BlockSpec((1, 1, S, hd), lambda b, h: (b, h, 0, 0)),
                pl.BlockSpec((1, 1, S, hd), lambda b, h: (b, h // rep, 0, 0)),
                pl.BlockSpec((1, 1, S, hd), lambda b, h: (b, h // rep, 0, 0)),
                pl.BlockSpec((S, S), lambda b, h: (0, 0)),
            ],
            out_specs=pl.BlockSpec((1, 1, S, hd), lambda b, h: (b, h, 0, 0)),
        ),
        compiler_params=pltpu.CompilerParams(
            dimension_semantics=("parallel", "parallel")),
    )(q, k, v, mask)


# --------------------------------------------------------------------------- #
# SwiGLU elementwise: silu(gate) * up
# --------------------------------------------------------------------------- #
def _silu_mul_kernel(g_ref, u_ref, o_ref):
    g = g_ref[...].astype(jnp.float32)
    u = u_ref[...].astype(jnp.float32)
    o_ref[...] = (g * (1.0 / (1.0 + jnp.exp(-g))) * u).astype(o_ref.dtype)


def pallas_silu_mul(g, u):
    T, F = g.shape
    TB = _pick_tile(T, 256)
    return pl.pallas_call(
        _silu_mul_kernel,
        out_shape=jax.ShapeDtypeStruct((T, F), jnp.bfloat16),
        grid_spec=pltpu.PrefetchScalarGridSpec(
            num_scalar_prefetch=0,
            grid=(T // TB,),
            in_specs=[
                pl.BlockSpec((TB, F), lambda i: (i, 0)),
                pl.BlockSpec((TB, F), lambda i: (i, 0)),
            ],
            out_specs=pl.BlockSpec((TB, F), lambda i: (i, 0)),
        ),
        compiler_params=pltpu.CompilerParams(dimension_semantics=("parallel",)),
    )(g, u)


# --------------------------------------------------------------------------- #
# Full Transformer forward (Pallas kernels + thin jnp glue for reshapes/resid)
# --------------------------------------------------------------------------- #
def transformer_forward(params, input_ids, cos, sin, positions, args, mode="decode"):
    B, S, D = input_ids.shape
    T = B * S
    H, Hkv, hd = args.n_heads, args.n_kv_heads, args.head_dim
    scale = float(hd) ** -0.5
    h = input_ids.astype(jnp.bfloat16)

    if S > 1:
        ii = jnp.arange(S)[:, None]
        jj = jnp.arange(S)[None, :]
        allowed = (jj <= ii) & (jj >= ii - args.sliding_window)
        mask = jnp.where(allowed, 0.0, -1e9).astype(jnp.float32)
    else:
        # TODO(synk): decode path with rolling KV cache not implemented.
        mask = jnp.zeros((S, S), jnp.float32)

    for L in params["layers"]:
        # ---- attention block
        x = pallas_rmsnorm(h.reshape(T, D), L["input_ln"], args.norm_eps)
        xq = pallas_linear(x, L["wq"], L["bq"])
        xk = pallas_linear(x, L["wk"], L["bk"])
        xv = pallas_linear(x, L["wv"], L["bv"])
        q = xq.reshape(B, S, H, hd).transpose(0, 2, 1, 3)
        k = xk.reshape(B, S, Hkv, hd).transpose(0, 2, 1, 3)
        v = xv.reshape(B, S, Hkv, hd).transpose(0, 2, 1, 3)
        q = pallas_rope(q.reshape(B * H, S, hd), cos, sin).reshape(B, H, S, hd)
        k = pallas_rope(k.reshape(B * Hkv, S, hd), cos, sin).reshape(B, Hkv, S, hd)
        # TODO(synk): cache_k/cache_v scatter side effect omitted (no effect on prefill output).
        attn = pallas_attention(q, k, v, mask, scale)            # (B, H, S, hd)
        attn = attn.transpose(0, 2, 1, 3).reshape(T, H * hd)
        h = h + pallas_linear(attn, L["wo"]).reshape(B, S, D)

        # ---- MLP block (SwiGLU)
        x2 = pallas_rmsnorm(h.reshape(T, D), L["post_ln"], args.norm_eps)
        g = pallas_linear(x2, L["wg"])
        u = pallas_linear(x2, L["wu"])
        f = pallas_silu_mul(g, u)
        h = h + pallas_linear(f, L["wd"]).reshape(B, S, D)

    if mode == "prefill":
        return h.astype(jnp.float32)
    hn = pallas_rmsnorm(h.reshape(T, D), params["final_ln"], args.norm_eps)
    logits = pallas_linear(hn, params["lm_head"], out_dtype=jnp.float32)
    return logits.reshape(B, S, args.vocab_size)


# --------------------------------------------------------------------------- #
# Parameters + pure-JAX reference (mirrors kernel math for validation)
# --------------------------------------------------------------------------- #
def init_params(key, args):
    def dense(k, shape, scale=0.02):
        return (scale * jax.random.normal(k, shape, jnp.float32)).astype(jnp.bfloat16)

    layers = []
    for l in range(args.n_layers):
        ks = jax.random.split(jax.random.fold_in(key, l), 10)
        layers.append(dict(
            input_ln=jnp.ones((args.dim,), jnp.bfloat16),
            post_ln=jnp.ones((args.dim,), jnp.bfloat16),
            wq=dense(ks[0], (args.dim, args.n_heads * args.head_dim)),
            bq=dense(ks[1], (args.n_heads * args.head_dim,)),
            wk=dense(ks[2], (args.dim, args.n_kv_heads * args.head_dim)),
            bk=dense(ks[3], (args.n_kv_heads * args.head_dim,)),
            wv=dense(ks[4], (args.dim, args.n_kv_heads * args.head_dim)),
            bv=dense(ks[5], (args.n_kv_heads * args.head_dim,)),
            wo=dense(ks[6], (args.n_heads * args.head_dim, args.dim)),
            wg=dense(ks[7], (args.dim, args.hidden_dim)),
            wu=dense(ks[8], (args.dim, args.hidden_dim)),
            wd=dense(ks[9], (args.hidden_dim, args.dim)),
        ))
    return dict(
        layers=layers,
        final_ln=jnp.ones((args.dim,), jnp.bfloat16),
        lm_head=dense(jax.random.fold_in(key, 999), (args.dim, args.vocab_size)),
    )


def ref_forward(params, input_ids, cos, sin, args, mode="decode"):
    B, S, D = input_ids.shape
    T = B * S
    H, Hkv, hd = args.n_heads, args.n_kv_heads, args.head_dim
    rep = H // Hkv
    scale = float(hd) ** -0.5
    h = input_ids.astype(jnp.bfloat16)

    ii = jnp.arange(S)[:, None]
    jj = jnp.arange(S)[None, :]
    allowed = (jj <= ii) & (jj >= ii - args.sliding_window)
    mask = jnp.where(allowed, 0.0, -1e9).astype(jnp.float32)

    def rms(x, w):
        xf = x.astype(jnp.float32)
        inv = jax.lax.rsqrt(jnp.mean(xf * xf, axis=-1, keepdims=True) + args.norm_eps)
        return (xf * inv).astype(jnp.bfloat16) * w

    def lin(x, w, b=None, out_dtype=jnp.bfloat16):
        acc = jnp.dot(x.astype(jnp.bfloat16), w, preferred_element_type=jnp.float32)
        if b is not None:
            acc = acc + b.astype(jnp.float32)
        return acc.astype(out_dtype)

    def rope(x):
        xf = x.astype(jnp.float32)
        x1, x2 = xf[..., : hd // 2], xf[..., hd // 2:]
        c, s = cos[None, :, :], sin[None, :, :]
        return jnp.concatenate([x1 * c - x2 * s, x1 * s + x2 * c], -1).astype(x.dtype)

    for L in params["layers"]:
        x = rms(h.reshape(T, D), L["input_ln"])
        q = lin(x, L["wq"], L["bq"]).reshape(B, S, H, hd).transpose(0, 2, 1, 3)
        k = lin(x, L["wk"], L["bk"]).reshape(B, S, Hkv, hd).transpose(0, 2, 1, 3)
        v = lin(x, L["wv"], L["bv"]).reshape(B, S, Hkv, hd).transpose(0, 2, 1, 3)
        q = rope(q.reshape(B * H, S, hd)).reshape(B, H, S, hd)
        k = rope(k.reshape(B * Hkv, S, hd)).reshape(B, Hkv, S, hd)
        kr = jnp.repeat(k, rep, axis=1)
        vr = jnp.repeat(v, rep, axis=1)
        s = jnp.einsum("bhqd,bhkd->bhqk", q, kr, preferred_element_type=jnp.float32)
        s = s * scale + mask[None, None]
        m = jnp.max(s, axis=-1, keepdims=True)
        p = jnp.exp(s - m)
        p = p / jnp.sum(p, axis=-1, keepdims=True)
        o = jnp.einsum("bhqk,bhkd->bhqd", p.astype(jnp.bfloat16), vr,
                       preferred_element_type=jnp.float32).astype(jnp.bfloat16)
        o = o.transpose(0, 2, 1, 3).reshape(T, H * hd)
        h = h + lin(o, L["wo"]).reshape(B, S, D)

        x2 = rms(h.reshape(T, D), L["post_ln"])
        gf = lin(x2, L["wg"]).astype(jnp.float32)
        uf = lin(x2, L["wu"]).astype(jnp.float32)
        f = (gf * (1.0 / (1.0 + jnp.exp(-gf))) * uf).astype(jnp.bfloat16)
        h = h + lin(f, L["wd"]).reshape(B, S, D)

    if mode == "prefill":
        return h.astype(jnp.float32)
    hn = rms(h.reshape(T, D), params["final_ln"])
    return lin(hn, params["lm_head"], out_dtype=jnp.float32).reshape(B, S, args.vocab_size)


if __name__ == "__main__":
    args = ModelArgs(dim=128, n_layers=2, head_dim=64, hidden_dim=256,
                     n_heads=4, n_kv_heads=2, sliding_window=16,
                     norm_eps=1e-5, vocab_size=256, max_batch_size=2)
    B, S = 2, 8

    key = jax.random.PRNGKey(0)
    params = init_params(key, args)
    h0 = jax.random.normal(jax.random.fold_in(key, 123), (B, S, args.dim), jnp.float32)

    positions = jnp.arange(S, dtype=jnp.int32)
    inv_freq = 1.0 / (10000.0 ** (jnp.arange(0, args.head_dim, 2, dtype=jnp.float32)
                                  / args.head_dim))
    freqs = positions.astype(jnp.float32)[:, None] * inv_freq[None, :]
    cos, sin = jnp.cos(freqs), jnp.sin(freqs)

    logits = transformer_forward(params, h0, cos, sin, positions, args)
    logits = jax.block_until_ready(logits)

    ref = ref_forward(params, h0, cos, sin, args)
    err = float(jnp.max(jnp.abs(logits - ref)))

    assert logits.shape == (B, S, args.vocab_size)
    assert logits.dtype == jnp.float32
    assert bool(jnp.all(jnp.isfinite(logits)))
    assert err < 5e-2, f"mismatch vs reference, max abs err = {err}"
    print("KERNEL_OK")
</pallas_src>

<mosaic_0001>
module attributes {stable_mosaic.version = 11 : i64} {
  func.func @_rmsnorm_kernel(%arg0: i32, %arg1: memref<16x128xbf16, #tpu.memory_space<vmem>>, %arg2: memref<1x128xbf16, #tpu.memory_space<vmem>>, %arg3: memref<16x128xbf16, #tpu.memory_space<vmem>>) attributes {dimension_semantics = [#tpu.dimension_semantics<parallel>], iteration_bounds = array<i64: 1>, scalar_prefetch = 0 : i64, scratch_operands = 0 : i64, tpu.core_type = #tpu.core_type<tc>, window_params = [{transform_indices = @transform_0, window_bounds = array<i64: 16, 128>}, {pipeline_mode = #tpu.pipeline_mode<synchronous>, transform_indices = @transform_1, window_bounds = array<i64: 1, 128>}, {transform_indices = @transform_2, window_bounds = array<i64: 16, 128>}]} {
    %c0 = arith.constant 0 : index
    %c0_0 = arith.constant 0 : index
    %0 = vector.load %arg1[%c0, %c0_0] : memref<16x128xbf16, #tpu.memory_space<vmem>>, vector<16x128xbf16>
    %1 = arith.extf %0 : vector<16x128xbf16> to vector<16x128xf32>
    %2 = arith.mulf %1, %1 : vector<16x128xf32>
    %cst = arith.constant dense<0.000000e+00> : vector<16xf32>
    %3 = vector.multi_reduction <add>, %2, %cst [1] : vector<16x128xf32> to vector<16xf32>
    %4 = vector.shape_cast %3 : vector<16xf32> to vector<16x1xf32>
    %cst_1 = arith.constant 1.280000e+02 : f32
    %5 = vector.broadcast %cst_1 : f32 to vector<16x1xf32>
    %6 = arith.divf %4, %5 : vector<16x1xf32>
    %cst_2 = arith.constant 9.99999974E-6 : f32
    %7 = vector.broadcast %cst_2 : f32 to vector<16x1xf32>
    %8 = arith.addf %6, %7 : vector<16x1xf32>
    %9 = math.rsqrt %8 : vector<16x1xf32>
    %10 = vector.broadcast %9 : vector<16x1xf32> to vector<16x128xf32>
    %11 = arith.mulf %1, %10 : vector<16x128xf32>
    %12 = arith.truncf %11 : vector<16x128xf32> to vector<16x128xbf16>
    %c0_3 = arith.constant 0 : index
    %c0_4 = arith.constant 0 : index
    %13 = vector.load %arg2[%c0_3, %c0_4] : memref<1x128xbf16, #tpu.memory_space<vmem>>, vector<1x128xbf16>
    %14 = vector.broadcast %13 : vector<1x128xbf16> to vector<16x128xbf16>
    %15 = arith.mulf %12, %14 : vector<16x128xbf16>
    %c0_5 = arith.constant 0 : index
    %c0_6 = arith.constant 0 : index
    %16 = vector.load %arg3[%c0_5, %c0_6] : memref<16x128xbf16, #tpu.memory_space<vmem>>, vector<16x128xbf16>
    tpu.vector_store %arg3[%c0_5, %c0_6], %15 {strides = array<i32>} : memref<16x128xbf16, #tpu.memory_space<vmem>>, vector<16x128xbf16>,
    return
  }
  func.func @transform_0(%arg0: i32) -> (i32, i32) {
    %c0_i32 = arith.constant 0 : i32
    %c0_i32_0 = arith.constant 0 : i32
    return %arg0, %c0_i32 : i32, i32
  }
  func.func @transform_1(%arg0: i32) -> (i32, i32) {
    %c0_i32 = arith.constant 0 : i32
    %c0_i32_0 = arith.constant 0 : i32
    %c0_i32_1 = arith.constant 0 : i32
    return %c0_i32, %c0_i32_0 : i32, i32
  }
  func.func @transform_2(%arg0: i32) -> (i32, i32) {
    %c0_i32 = arith.constant 0 : i32
    %c0_i32_0 = arith.constant 0 : i32
    return %arg0, %c0_i32 : i32, i32
  }
}

</mosaic_0001>

<llo_original>
// kernel: tpu_custom_call.1
$region0: #{tpu_custom_call.1}
  #allocation0 [shape = 'u32[]', space=smem, size = 0x4, offset = 0x4, fixed_abs, tag = 'smem constant byte address 0x4 - core index']
  #allocation1 [shape = 'u32[144,128]{1,0:T(1,128)}', space=vmem, size = 0x12000, scoped, tag = 'internal scratch']
  %s0 = inlined_call_operand.hbm [shape: bf16[16,128], index: 0, kind: input, shape index: {}]
  %s1 = inlined_call_operand.vmem [shape: bf16[1,128], index: 1, kind: input, shape index: {}]
  %s2 = inlined_call_operand.hbm [shape: bf16[16,128], index: 2, kind: output, shape index: {}]
  %s3 = sld [smem:[#allocation0]]
  $region22: #{tpu_custom_call.1} parent=0
    _
  %s5 = ssub.s32 1, %s3
  %s6 = scalar_select 0, %s5, %s3
  $region1: #{tpu_custom_call.1} parent=0
    #allocation2 [shape = 'u8[4096]{0}', space=vmem, size = 0x1000, scoped, tag = 'input window, operand 0, single buffered']
    #allocation3 [shape = 's32[1]{0}', space=sflag, size = 0x4, scoped, tag = 'scoped memory for tpu_custom_call.1']
    #allocation4 [shape = 's32[1]{0}', space=sflag, size = 0x4, scoped, tag = 'scoped memory for tpu_custom_call.1']
    #allocation5 [shape = 'u8[4096]{0}', space=vmem, size = 0x1000, scoped, tag = 'output window, operand 0, single buffered']
    %7 = vsyncpa [#allocation3], 0
    %8 = vsyncpa [#allocation4], 0
    // Predicated region
    $region2: #{tpu_custom_call.1} parent=1 // pred_check
      _
    $region3: #{tpu_custom_call.1} parent=1 // pred_check_branch
      %10 = sbr.rel (0) target = $region5
    $region4: #{tpu_custom_call.1} parent=1 // pred_region
      %s12 = ssub.s32 128, 128
      %13 = vsyncadd [#allocation3], %s12
      %s14 = sshll.u32 [#allocation2], 4
      %s15 = int_to_ptr.vmem [resolvable:$true] %s14
      %20 = dma.hbm_to_vmem [thread:$0]  %s0, 128, %s15, [#allocation3], 64, 64, 4
    $region5: #{tpu_custom_call.1} parent=1 // pred_fallthru
      _
    // Predicated region
    $region6: #{tpu_custom_call.1} parent=1 // pred_check
      _
    $region7: #{tpu_custom_call.1} parent=1 // pred_check_branch
      %22 = sbr.rel (0) target = $region9
    $region8: #{tpu_custom_call.1} parent=1 // pred_region
      _
    $region9: #{tpu_custom_call.1} parent=1 // pred_fallthru
      _
    // Predicated region
    $region10: #{tpu_custom_call.1} parent=1 // pred_check
      _
    $region11: #{tpu_custom_call.1} parent=1 // pred_check_branch
      %24 = sbr.rel (0) target = $region13
    $region12: #{tpu_custom_call.1} parent=1 // pred_region
      %25 = dma.done [#allocation3], 128
    $region13: #{tpu_custom_call.1} parent=1 // pred_fallthru
      _
    %v26 = vld [vmem:[#allocation2] sm:$0xf]
    %v27 = vld [vmem:[#allocation2 + $0x4] sm:$0xf]
    %v28 = vunpack.c.l.bf16 %v26
    %v29 = vunpack.c.l.bf16 %v27
    %v30 = vmul.f32 %v28, %v28
    %v31 = vmul.f32 %v29, %v29
    %32 = vadd.xlane.f32.xlu0 %v30
    %v33 = vpop.xlane.xlu0 %32
    %34 = vadd.xlane.f32.xlu0 %v31
    %v35 = vpop.xlane.xlu0 %34
    %v36 = vrcp.pop 128.0
    %v37 = vmul.f32 %v33, %v36
    %v38 = vmul.f32 %v35, %v36
    %v39 = vadd.f32 %v37, 1e-05
    %v40 = vadd.f32 %v38, 1e-05
    %v41 = vrsqrt.pop %v39
    %v42 = vrsqrt.pop %v40
    %v43 = vmul.f32 %v28, %v41
    %v44 = vmul.f32 %v29, %v42
    %v45 = vpack.c.bf16 %v44, %v43
    %v46 = vld [vmem:[%s1] sm:$0x1]
    %v48 = vpack.i.b16 %v46, %v46
    %v50 = vlaneseq
    %v51 = vshrl.u32 %v50, 7
    %v52 = vsub.s32 0, %v51
    %v53 = vrot.slane %v48, %v52
    %v54 = vmul.bf16 %v45, %v53
    %v56 = vunpack.c.l.b16 %v54
    %v57 = vunpack.c.h.b16 %v54
    %v58 = vpack.c.b16 %v56, %v56
    %v59 = vpack.c.b16 %v57, %v57
    %62 = vst [vmem:[#allocation5] sm:$0xf] %v58
    %63 = vst [vmem:[#allocation5 + $0x4] sm:$0xf] %v59
    // Predicated region
    $region14: #{tpu_custom_call.1} parent=1 // pred_check
      _
    $region15: #{tpu_custom_call.1} parent=1 // pred_check_branch
      %65 = sbr.rel (0) target = $region17
    $region16: #{tpu_custom_call.1} parent=1 // pred_region
      %s67 = ssub.s32 128, 128
      %68 = vsyncadd [#allocation4], %s67
      %s69 = sshll.u32 [#allocation5], 4
      %s70 = int_to_ptr.vmem [resolvable:$true] %s69
      %75 = dma.vmem_to_hbm [thread:$0]  %s70, 128, %s2, [#allocation4], 64, 64, 4
    $region17: #{tpu_custom_call.1} parent=1 // pred_fallthru
      _
    // Predicated region
    $region18: #{tpu_custom_call.1} parent=1 // pred_check
      _
    $region19: #{tpu_custom_call.1} parent=1 // pred_check_branch
      %77 = sbr.rel (0) target = $region21
    $region20: #{tpu_custom_call.1} parent=1 // pred_region
      %78 = dma.done [#allocation4], 128
    $region21: #{tpu_custom_call.1} parent=1 // pred_fallthru
      _
    %79 = vsyncpa [#allocation3], 1
    %80 = vsyncpa [#allocation4], 1

</llo_original>
